<compile_context>
chip_gen: v6e
topology: v6e:2x2x1
jax: 0.10.0
libtpu: 0.0.40
codegen_flags: <defaults>
</compile_context>

<pallas_src>
import functools

import jax
import jax.numpy as jnp
from jax.experimental import pallas as pl
from jax.experimental.pallas import tpu as pltpu


# ---------------------------------------------------------------------------
# helpers
# ---------------------------------------------------------------------------
def _round_up(x, m):
    return ((x + m - 1) // m) * m


def _largest_divisor_tile(total, cap, quantum):
    """Largest multiple of `quantum` that is <= cap and divides `total`.
    `total` must itself be a multiple of `quantum`."""
    t = min(cap, total)
    t -= t % quantum
    while total % t:
        t -= quantum
    return t


def _pad2(x, rows, cols):
    r, c = x.shape
    if r == rows and c == cols:
        return x
    return jnp.pad(x, ((0, rows - r), (0, cols - c)))


def _log_softmax_last(x):
    m = jnp.max(x, axis=-1, keepdims=True)
    s = x - m
    return s - jnp.log(jnp.sum(jnp.exp(s), axis=-1, keepdims=True))


# ---------------------------------------------------------------------------
# pass 1: JS divergence -> scalar alpha (global reduction over the whole input)
# ---------------------------------------------------------------------------
def _alpha_kernel(text_ref, image_ref, alpha_ref, acc_ref, *, inv_two_batch):
    i = pl.program_id(0)

    @pl.when(i == 0)
    def _():
        acc_ref[0] = jnp.float32(0.0)

    t = text_ref[...]
    im = image_ref[...]
    # log-softmax once per distribution; softmax derived via exp
    # (no duplicate max/sum reductions, no divides).
    log_m = _log_softmax_last((t + im) * 0.5)
    log_p = _log_softmax_last(t)
    log_q = _log_softmax_last(im)
    p = jnp.exp(log_p)
    q = jnp.exp(log_q)
    acc_ref[0] += jnp.sum(p * (log_p - log_m) + q * (log_q - log_m))

    @pl.when(i == pl.num_programs(0) - 1)
    def _():
        # alpha = 0.5*kl1 + 0.5*kl2 with 'batchmean'  ==  (sum1+sum2) * 0.5/B
        alpha_ref[0, 0] = acc_ref[0] * inv_two_batch


def _js_alpha(text, image):
    B, D = text.shape
    # keep each (tb, D) f32 block around <= 2 MiB so double-buffering stays
    # inside the scoped-VMEM default on every TPU generation.
    tb_cap = max(8, min(128, (2 * 1024 * 1024 // max(D * 4, 1)) // 8 * 8))
    tb = min(tb_cap, _round_up(B, 8))
    Bp = _round_up(B, tb)
    # zero rows contribute exactly 0 to both KL sums -> batch padding is safe;
    # 'batchmean' still divides by the ORIGINAL batch size.
    t_p = _pad2(text, Bp, D)
    i_p = _pad2(image, Bp, D)

    return pl.pallas_call(
        functools.partial(_alpha_kernel, inv_two_batch=0.5 / B),
        out_shape=jax.ShapeDtypeStruct((1, 1), jnp.float32),
        grid=(Bp // tb,),
        in_specs=[
            pl.BlockSpec((tb, D), lambda i: (i, 0)),
            pl.BlockSpec((tb, D), lambda i: (i, 0)),
        ],
        out_specs=pl.BlockSpec((1, 1), lambda i: (0, 0),
                               memory_space=pltpu.MemorySpace.SMEM),
        scratch_shapes=[pltpu.SMEM((1,), jnp.float32)],
        compiler_params=pltpu.CompilerParams(
            dimension_semantics=("arbitrary",)),
    )(t_p, i_p)


# ---------------------------------------------------------------------------
# pass 2: fused matmul + blend
# ---------------------------------------------------------------------------
def _matmul_blend_kernel(alpha_ref, x_ref, w_ref, text_ref, image_ref,
                         out_ref, acc_ref):
    k = pl.program_id(2)

    @pl.when(k == 0)
    def _():
        acc_ref[...] = jnp.zeros_like(acc_ref)

    # single MXU matmul over K = 2*D:  [text || image] @ [[Wt],[Wi]]
    acc_ref[...] += jnp.dot(x_ref[...], w_ref[...],
                            preferred_element_type=jnp.float32)

    @pl.when(k == pl.num_programs(2) - 1)
    def _():
        alpha = alpha_ref[0, 0]
        # alpha*text + alpha*image == alpha*(text + image)   (f32 path)
        out_ref[...] = ((1.0 - alpha) * acc_ref[...]
                        + alpha * (text_ref[...] + image_ref[...])
                        ).astype(out_ref.dtype)


def fusion_forward(text, image, text_weight, image_weight, *, use_bf16=True):
    """Pallas forward pass of the PyTorch `Fusion` module."""
    B, D = text.shape
    f32 = jnp.float32
    text = text.astype(f32)
    image = image.astype(f32)

    # ---- pass 1: global scalar alpha (cannot be tiled inside the matmul) ---
    alpha = _js_alpha(text, image)

    # ---- pass 2: tiled, fused matmul + blend -------------------------------
    Dp = _round_up(D, 128)                       # lane-dense feature dim
    tn = _largest_divisor_tile(Dp, 512, 128)
    K = 2 * Dp
    tk = _largest_divisor_tile(K, 512, 128)
    tm = min(256, _round_up(B, 8))
    Bp = _round_up(B, tm)

    t_p = _pad2(text, Bp, Dp)                    # f32 copies for the blend
    i_p = _pad2(image, Bp, Dp)
    mx_dtype = jnp.bfloat16 if use_bf16 else f32
    x = jnp.concatenate([t_p, i_p], axis=-1).astype(mx_dtype)        # (Bp, 2Dp)
    w = jnp.concatenate(
        [_pad2(text_weight.astype(f32), Dp, Dp),
         _pad2(image_weight.astype(f32), Dp, Dp)], axis=0).astype(mx_dtype)

    out = pl.pallas_call(
        _matmul_blend_kernel,
        out_shape=jax.ShapeDtypeStruct((Bp, Dp), f32),
        grid=(Bp // tm, Dp // tn, K // tk),
        in_specs=[
            pl.BlockSpec((1, 1), lambda i, j, k: (0, 0),
                         memory_space=pltpu.MemorySpace.SMEM),       # alpha
            pl.BlockSpec((tm, tk), lambda i, j, k: (i, k)),          # x (MXU)
            pl.BlockSpec((tk, tn), lambda i, j, k: (k, j)),          # [Wt;Wi]
            pl.BlockSpec((tm, tn), lambda i, j, k: (i, j)),          # text f32
            pl.BlockSpec((tm, tn), lambda i, j, k: (i, j)),          # image f32
        ],
        out_specs=pl.BlockSpec((tm, tn), lambda i, j, k: (i, j)),
        scratch_shapes=[pltpu.VMEM((tm, tn), jnp.float32)],
        compiler_params=pltpu.CompilerParams(
            dimension_semantics=("parallel", "parallel", "arbitrary")),
    )(alpha, x, w, t_p, i_p)

    return out[:B, :D]


# ---------------------------------------------------------------------------
# pure-JAX reference mirroring the PyTorch forward
# ---------------------------------------------------------------------------
def _reference(text, image, tw, iw, *, use_bf16=True):
    batch = text.shape[0]
    log_m = jax.nn.log_softmax((text + image) * 0.5, axis=-1)
    log_p = jax.nn.log_softmax(text, axis=-1)
    log_q = jax.nn.log_softmax(image, axis=-1)
    p, q = jnp.exp(log_p), jnp.exp(log_q)
    kl1 = jnp.sum(p * (log_p - log_m)) / batch
    kl2 = jnp.sum(q * (log_q - log_m)) / batch
    alpha = 0.5 * (kl1 + kl2)
    if use_bf16:   # mirror the kernel's bf16-operand / f32-accumulate matmul
        fusion = (jnp.dot(text.astype(jnp.bfloat16), tw.astype(jnp.bfloat16),
                          preferred_element_type=jnp.float32)
                  + jnp.dot(image.astype(jnp.bfloat16), iw.astype(jnp.bfloat16),
                            preferred_element_type=jnp.float32))
    else:
        fusion = text @ tw + image @ iw
    return (1.0 - alpha) * fusion + alpha * text + alpha * image


if __name__ == "__main__":
    d_model = 32
    batch = 8

    key = jax.random.PRNGKey(0)
    k_text, k_image, k_tw, k_iw, k_fw = jax.random.split(key, 5)

    # module __init__ parameters ("randn"-style); fusion_weight / act_layer
    # exist in the module but are unused in forward().
    text_weight = jax.random.normal(k_tw, (d_model, d_model), dtype=jnp.float32)
    image_weight = jax.random.normal(k_iw, (d_model, d_model), dtype=jnp.float32)
    fusion_weight = jax.random.normal(k_fw, (d_model, d_model), dtype=jnp.float32)

    text = jax.random.normal(k_text, (batch, d_model), dtype=jnp.float32)
    image = jax.random.normal(k_image, (batch, d_model), dtype=jnp.float32)

    # bf16-MXU path (primary, per perf review)
    out_bf16 = jax.block_until_ready(
        fusion_forward(text, image, text_weight, image_weight, use_bf16=True))
    ref_bf16 = _reference(text, image, text_weight, image_weight, use_bf16=True)
    assert out_bf16.shape == (batch, d_model)
    assert jnp.allclose(out_bf16, ref_bf16, atol=1e-2, rtol=1e-2), \
        "bf16-path mismatch vs reference"

    # full-f32 MXU path (matches PyTorch f32 semantics tightly)
    out_f32 = jax.block_until_ready(
        fusion_forward(text, image, text_weight, image_weight, use_bf16=False))
    ref_f32 = _reference(text, image, text_weight, image_weight, use_bf16=False)
    assert jnp.allclose(out_f32, ref_f32, atol=1e-3, rtol=1e-3), \
        "f32-path mismatch vs reference"

    print("KERNEL_OK")
</pallas_src>

<mosaic_0001>
module attributes {stable_mosaic.version = 11 : i64} {
  func.func @_alpha_kernel(%arg0: i32, %arg1: memref<8x32xf32, #tpu.memory_space<vmem>>, %arg2: memref<8x32xf32, #tpu.memory_space<vmem>>, %arg3: memref<1x1xf32, #tpu.memory_space<smem>>, %arg4: memref<1xf32, #tpu.memory_space<smem>>) attributes {dimension_semantics = [#tpu.dimension_semantics<arbitrary>], iteration_bounds = array<i64: 1>, scalar_prefetch = 0 : i64, scratch_operands = 1 : i64, tpu.core_type = #tpu.core_type<tc>, window_params = [{transform_indices = @transform_0, window_bounds = array<i64: 8, 32>}, {transform_indices = @transform_1, window_bounds = array<i64: 8, 32>}, {transform_indices = @transform_2, window_bounds = array<i64: 1, 1>}]} {
    %c0_i32 = arith.constant 0 : i32
    %0 = arith.cmpi eq, %arg0, %c0_i32 : i32
    %1 = arith.extui %0 : i1 to i32
    %c0_i32_0 = arith.constant 0 : i32
    %2 = arith.cmpi ne, %1, %c0_i32_0 : i32
    scf.if %2 {
      %cst_15 = arith.constant 0.000000e+00 : f32
      %c0_16 = arith.constant 0 : index
      %55 = memref.load %arg4[%c0_16] : memref<1xf32, #tpu.memory_space<smem>>
      memref.store %cst_15, %arg4[%c0_16] : memref<1xf32, #tpu.memory_space<smem>>
    } else {
    }
    %c0 = arith.constant 0 : index
    %c0_1 = arith.constant 0 : index
    %3 = vector.load %arg1[%c0, %c0_1] : memref<8x32xf32, #tpu.memory_space<vmem>>, vector<8x32xf32>
    %c0_2 = arith.constant 0 : index
    %c0_3 = arith.constant 0 : index
    %4 = vector.load %arg2[%c0_2, %c0_3] : memref<8x32xf32, #tpu.memory_space<vmem>>, vector<8x32xf32>
    %5 = arith.addf %3, %4 : vector<8x32xf32>
    %cst = arith.constant 5.000000e-01 : f32
    %6 = vector.broadcast %cst : f32 to vector<8x32xf32>
    %7 = arith.mulf %5, %6 : vector<8x32xf32>
    %cst_4 = arith.constant dense<0xFF800000> : vector<8xf32>
    %8 = vector.multi_reduction <maximumf>, %7, %cst_4 [1] : vector<8x32xf32> to vector<8xf32>
    %9 = vector.shape_cast %8 : vector<8xf32> to vector<8x1xf32>
    %10 = vector.broadcast %9 : vector<8x1xf32> to vector<8x32xf32>
    %11 = arith.subf %7, %10 : vector<8x32xf32>
    %12 = math.exp %11 : vector<8x32xf32>
    %cst_5 = arith.constant dense<0.000000e+00> : vector<8xf32>
    %13 = vector.multi_reduction <add>, %12, %cst_5 [1] : vector<8x32xf32> to vector<8xf32>
    %14 = vector.shape_cast %13 : vector<8xf32> to vector<8x1xf32>
    %15 = math.log %14 : vector<8x1xf32>
    %16 = vector.broadcast %15 : vector<8x1xf32> to vector<8x32xf32>
    %17 = arith.subf %11, %16 : vector<8x32xf32>
    %cst_6 = arith.constant dense<0xFF800000> : vector<8xf32>
    %18 = vector.multi_reduction <maximumf>, %3, %cst_6 [1] : vector<8x32xf32> to vector<8xf32>
    %19 = vector.shape_cast %18 : vector<8xf32> to vector<8x1xf32>
    %20 = vector.broadcast %19 : vector<8x1xf32> to vector<8x32xf32>
    %21 = arith.subf %3, %20 : vector<8x32xf32>
    %22 = math.exp %21 : vector<8x32xf32>
    %cst_7 = arith.constant dense<0.000000e+00> : vector<8xf32>
    %23 = vector.multi_reduction <add>, %22, %cst_7 [1] : vector<8x32xf32> to vector<8xf32>
    %24 = vector.shape_cast %23 : vector<8xf32> to vector<8x1xf32>
    %25 = math.log %24 : vector<8x1xf32>
    %26 = vector.broadcast %25 : vector<8x1xf32> to vector<8x32xf32>
    %27 = arith.subf %21, %26 : vector<8x32xf32>
    %cst_8 = arith.constant dense<0xFF800000> : vector<8xf32>
    %28 = vector.multi_reduction <maximumf>, %4, %cst_8 [1] : vector<8x32xf32> to vector<8xf32>
    %29 = vector.shape_cast %28 : vector<8xf32> to vector<8x1xf32>
    %30 = vector.broadcast %29 : vector<8x1xf32> to vector<8x32xf32>
    %31 = arith.subf %4, %30 : vector<8x32xf32>
    %32 = math.exp %31 : vector<8x32xf32>
    %cst_9 = arith.constant dense<0.000000e+00> : vector<8xf32>
    %33 = vector.multi_reduction <add>, %32, %cst_9 [1] : vector<8x32xf32> to vector<8xf32>
    %34 = vector.shape_cast %33 : vector<8xf32> to vector<8x1xf32>
    %35 = math.log %34 : vector<8x1xf32>
    %36 = vector.broadcast %35 : vector<8x1xf32> to vector<8x32xf32>
    %37 = arith.subf %31, %36 : vector<8x32xf32>
    %38 = math.exp %27 : vector<8x32xf32>
    %39 = math.exp %37 : vector<8x32xf32>
    %c0_10 = arith.constant 0 : index
    %40 = memref.load %arg4[%c0_10] : memref<1xf32, #tpu.memory_space<smem>>
    %41 = arith.subf %27, %17 : vector<8x32xf32>
    %42 = arith.mulf %38, %41 : vector<8x32xf32>
    %43 = arith.subf %37, %17 : vector<8x32xf32>
    %44 = arith.mulf %39, %43 : vector<8x32xf32>
    %45 = arith.addf %42, %44 : vector<8x32xf32>
    %46 = vector.shape_cast %45 : vector<8x32xf32> to vector<1x8x32xf32>
    %cst_11 = arith.constant dense<0.000000e+00> : vector<1xf32>
    %47 = vector.multi_reduction <add>, %46, %cst_11 [1, 2] : vector<1x8x32xf32> to vector<1xf32>
    %48 = vector.shape_cast %47 : vector<1xf32> to vector<1x1x1xf32>
    %49 = vector.extract %48[0, 0, 0] : f32 from vector<1x1x1xf32>
    %50 = arith.addf %40, %49 : f32
    %c0_12 = arith.constant 0 : index
    %51 = memref.load %arg4[%c0_12] : memref<1xf32, #tpu.memory_space<smem>>
    memref.store %50, %arg4[%c0_12] : memref<1xf32, #tpu.memory_space<smem>>
    %c0_i32_13 = arith.constant 0 : i32
    %52 = arith.cmpi eq, %arg0, %c0_i32_13 : i32
    %53 = arith.extui %52 : i1 to i32
    %c0_i32_14 = arith.constant 0 : i32
    %54 = arith.cmpi ne, %53, %c0_i32_14 : i32
    scf.if %54 {
      %c0_15 = arith.constant 0 : index
      %55 = memref.load %arg4[%c0_15] : memref<1xf32, #tpu.memory_space<smem>>
      %cst_16 = arith.constant 6.250000e-02 : f32
      %56 = arith.mulf %55, %cst_16 : f32
      %c0_17 = arith.constant 0 : index
      %c0_18 = arith.constant 0 : index
      %57 = memref.load %arg3[%c0_17, %c0_18] : memref<1x1xf32, #tpu.memory_space<smem>>
      memref.store %56, %arg3[%c0_17, %c0_18] : memref<1x1xf32, #tpu.memory_space<smem>>
    } else {
    }
    return
  }
  func.func @transform_0(%arg0: i32) -> (i32, i32) {
    %c0_i32 = arith.constant 0 : i32
    %c0_i32_0 = arith.constant 0 : i32
    return %arg0, %c0_i32 : i32, i32
  }
  func.func @transform_1(%arg0: i32) -> (i32, i32) {
    %c0_i32 = arith.constant 0 : i32
    %c0_i32_0 = arith.constant 0 : i32
    return %arg0, %c0_i32 : i32, i32
  }
  func.func @transform_2(%arg0: i32) -> (i32, i32) {
    %c0_i32 = arith.constant 0 : i32
    %c0_i32_0 = arith.constant 0 : i32
    %c0_i32_1 = arith.constant 0 : i32
    return %c0_i32, %c0_i32_0 : i32, i32
  }
}

</mosaic_0001>

<llo_original>
// kernel: tpu_custom_call.1
$region0: #{tpu_custom_call.1}
  #allocation0 [shape = 'u32[]', space=smem, size = 0x4, offset = 0x4, fixed_abs, tag = 'smem constant byte address 0x4 - core index']
  #allocation1 [shape = 'u32[144,128]{1,0:T(1,128)}', space=vmem, size = 0x12000, scoped, tag = 'internal scratch']
  #allocation2 [shape = 'f32[1]{0:T(128)}', space=smem, size = 0x200, scoped, tag = 'scratch operand']
  %s0 = inlined_call_operand.hbm [shape: f32[8,32], index: 0, kind: input, shape index: {}]
  %s1 = inlined_call_operand.hbm [shape: f32[8,32], index: 1, kind: input, shape index: {}]
  %s2 = inlined_call_operand.hbm [shape: f32[1,1], index: 2, kind: output, shape index: {}]
  %s3 = sld [smem:[#allocation0]]
  $region34: #{tpu_custom_call.1} parent=0
    _
  %s5 = ssub.s32 1, %s3
  %s6 = scalar_select 0, %s5, %s3
  $region1: #{tpu_custom_call.1} parent=0
    #allocation3 [shape = 'u8[4096]{0}', space=vmem, size = 0x1000, scoped, tag = 'input window, operand 0, single buffered']
    #allocation4 [shape = 's32[1]{0}', space=sflag, size = 0x4, scoped, tag = 'scoped memory for tpu_custom_call.1']
    #allocation5 [shape = 's32[1]{0}', space=sflag, size = 0x4, scoped, tag = 'scoped memory for tpu_custom_call.1']
    #allocation6 [shape = 'u8[4096]{0}', space=vmem, size = 0x1000, scoped, tag = 'input window, operand 1, single buffered']
    #allocation7 [shape = 's32[1]{0}', space=sflag, size = 0x4, scoped, tag = 'scoped memory for tpu_custom_call.1']
    #allocation8 [shape = 'u8[512]{0}', space=smem, size = 0x200, scoped, tag = 'output window, operand 0, single buffered']
    %7 = vsyncpa [#allocation4], 0
    %8 = vsyncpa [#allocation7], 0
    %9 = vsyncpa [#allocation5], 0
    // Predicated region
    $region2: #{tpu_custom_call.1} parent=1 // pred_check
      _
    $region3: #{tpu_custom_call.1} parent=1 // pred_check_branch
      %11 = sbr.rel (0) target = $region5
    $region4: #{tpu_custom_call.1} parent=1 // pred_region
      %s13 = ssub.s32 128, 128
      %14 = vsyncadd [#allocation4], %s13
      %s16 = sshll.u32 [#allocation3], 4
      %s17 = int_to_ptr.vmem [resolvable:$true] %s16
      %19 = dma.hbm_to_vmem [thread:$0]  %s0, 128, %s17, [#allocation4]
    $region5: #{tpu_custom_call.1} parent=1 // pred_fallthru
      _
    // Predicated region
    $region6: #{tpu_custom_call.1} parent=1 // pred_check
      _
    $region7: #{tpu_custom_call.1} parent=1 // pred_check_branch
      %21 = sbr.rel (0) target = $region9
    $region8: #{tpu_custom_call.1} parent=1 // pred_region
      %s23 = ssub.s32 128, 128
      %24 = vsyncadd [#allocation7], %s23
      %s26 = sshll.u32 [#allocation6], 4
      %s27 = int_to_ptr.vmem [resolvable:$true] %s26
      %29 = dma.hbm_to_vmem [thread:$0]  %s1, 128, %s27, [#allocation7]
    $region9: #{tpu_custom_call.1} parent=1 // pred_fallthru
      _
    // Predicated region
    $region10: #{tpu_custom_call.1} parent=1 // pred_check
      _
    $region11: #{tpu_custom_call.1} parent=1 // pred_check_branch
      %31 = sbr.rel (0) target = $region13
    $region12: #{tpu_custom_call.1} parent=1 // pred_region
      %32 = dma.done [#allocation4], 128
    $region13: #{tpu_custom_call.1} parent=1 // pred_fallthru
      _
    // Predicated region
    $region14: #{tpu_custom_call.1} parent=1 // pred_check
      _
    $region15: #{tpu_custom_call.1} parent=1 // pred_check_branch
      %34 = sbr.rel (0) target = $region17
    $region16: #{tpu_custom_call.1} parent=1 // pred_region
      %35 = dma.done [#allocation7], 128
    $region17: #{tpu_custom_call.1} parent=1 // pred_fallthru
      _
    %p36 = scmp.eq.s32.totalorder 0, 0
    // Predicated region
    $region18: #{tpu_custom_call.1} parent=1 // pred_check
      %p37 = pneg %p36
    $region19: #{tpu_custom_call.1} parent=1 // pred_check_branch
      %39 = sbr.rel (%p37) target = $region21
    $region20: #{tpu_custom_call.1} parent=1 // pred_region
      %s40 = scalar_lea.smem [#allocation2], 0
      %41 = sst [smem:[%s40]] 0.0
    $region21: #{tpu_custom_call.1} parent=1 // pred_fallthru
      _
    %v42 = vld [vmem:[#allocation3] sm:$0xff]
    %v43 = vld [vmem:[#allocation6] sm:$0xff]
    %v44 = vadd.f32 %v42, %v43
    %v45 = vmul.f32 %v44, 0.5
    %vm46 = vcmask 261120
    %v47 = vsel %vm46, %v45, -inf
    %48 = vmax.xlane.f32.xlu0 %v47
    %v49 = vpop.xlane.xlu0 %48
    %v50 = vsub.f32 %v45, %v49
    %v51 = vmul.f32 %v50, 1.442695
    %v52 = vpow.pop %v51
    %v53 = vsel %vm46, %v52, 0.0
    %54 = vadd.xlane.f32.xlu0 %v53
    %v55 = vpop.xlane.xlu0 %54
    %v56 = vlog2.pop %v55
    %v57 = vmul.f32 %v56, 0.6931472
    %v58 = vsub.f32 %v50, %v57
    %v59 = vsel %vm46, %v42, -inf
    %60 = vmax.xlane.f32.xlu0 %v59
    %v61 = vpop.xlane.xlu0 %60
    %v62 = vsub.f32 %v42, %v61
    %v63 = vmul.f32 %v62, 1.442695
    %v64 = vpow.pop %v63
    %v65 = vsel %vm46, %v64, 0.0
    %66 = vadd.xlane.f32.xlu0 %v65
    %v67 = vpop.xlane.xlu0 %66
    %v68 = vlog2.pop %v67
    %v69 = vmul.f32 %v68, 0.6931472
    %v70 = vsub.f32 %v62, %v69
    %v71 = vsel %vm46, %v43, -inf
    %72 = vmax.xlane.f32.xlu0 %v71
    %v73 = vpop.xlane.xlu0 %72
    %v74 = vsub.f32 %v43, %v73
    %v75 = vmul.f32 %v74, 1.442695
    %v76 = vpow.pop %v75
    %v77 = vsel %vm46, %v76, 0.0
    %78 = vadd.xlane.f32.xlu0 %v77
    %v79 = vpop.xlane.xlu0 %78
    %v80 = vlog2.pop %v79
    %v81 = vmul.f32 %v80, 0.6931472
    %v82 = vsub.f32 %v74, %v81
    %v83 = vmul.f32 %v70, 1.442695
    %v84 = vpow.pop %v83
    %v85 = vmul.f32 %v82, 1.442695
    %v86 = vpow.pop %v85
    %s87 = sld [smem:[#allocation2]]
    %v88 = vsub.f32 %v70, %v58
    %v89 = vmul.f32 %v84, %v88
    %v90 = vsub.f32 %v82, %v58
    %v91 = vmul.f32 %v86, %v90
    %v92 = vadd.f32 %v89, %v91
    %v93 = vsel %vm46, %v92, 0.0
    %94 = vadd.xlane.f32.xlu0 %v93
    %v95 = vpop.xlane.xlu0 %94
    %v96 = vrot.slane %v95, 4
    %v97 = vadd.f32 %v95, %v96
    %v98 = vrot.slane %v97, 2
    %v99 = vadd.f32 %v97, %v98
    %v100 = vrot.slane %v99, 1
    %v101 = vadd.f32 %v99, %v100
    %s102 = vtos %v101
    %s103 = sadd.f32 %s87, %s102
    %s104 = scalar_lea.smem [#allocation2], 0
    %105 = sst [smem:[%s104]] %s103
    // Predicated region
    $region22: #{tpu_custom_call.1} parent=1 // pred_check
      %p106 = pneg %p36
    $region23: #{tpu_custom_call.1} parent=1 // pred_check_branch
      %108 = sbr.rel (%p106) target = $region25
    $region24: #{tpu_custom_call.1} parent=1 // pred_region
      %s109 = sld [smem:[#allocation2]]
      %s110 = smul.f32 %s109, 0.0625
      %s111 = scalar_lea.smem [#allocation8], 0
      %112 = sst [smem:[%s111]] %s110
    $region25: #{tpu_custom_call.1} parent=1 // pred_fallthru
      _
    // Predicated region
    $region26: #{tpu_custom_call.1} parent=1 // pred_check
      _
    $region27: #{tpu_custom_call.1} parent=1 // pred_check_branch
      %114 = sbr.rel (0) target = $region29
    $region28: #{tpu_custom_call.1} parent=1 // pred_region
      %s116 = ssub.s32 16, 16
      %117 = vsyncadd [#allocation5], %s116
      %120 = dma.smem_to_hbm [#allocation8], 16, %s2, [#allocation5]
    $region29: #{tpu_custom_call.1} parent=1 // pred_fallthru
      _
    // Predicated region
    $region30: #{tpu_custom_call.1} parent=1 // pred_check
      _
    $region31: #{tpu_custom_call.1} parent=1 // pred_check_branch
      %122 = sbr.rel (0) target = $region33
    $region32: #{tpu_custom_call.1} parent=1 // pred_region
      %123 = dma.done [#allocation5], 16
    $region33: #{tpu_custom_call.1} parent=1 // pred_fallthru
      _
    %124 = sfence
    %125 = vsyncpa [#allocation4], 1
    %126 = vsyncpa [#allocation7], 1
    %127 = vsyncpa [#allocation5], 1

</llo_original>
